<compile_context>
chip_gen: v5e
topology: v5e:2x2
jax: 0.10.0
libtpu: 0.0.40
codegen_flags: <defaults>
</compile_context>

<pallas_src>
import functools

import jax
import jax.numpy as jnp
from jax.experimental import pallas as pl
from jax.experimental.pallas import tpu as pltpu


def _ada_rmsnorm_kernel(x_ref, e_ref, wt_ref, o_ref, *, eps: float):
    # x_ref, e_ref, o_ref: (tile_rows, D); wt_ref: (D, D) == W.T (VMEM-resident).
    x = x_ref[...].astype(jnp.float32)
    # RMS normalization (no mean subtraction), single-pass reduction (XLU+EUP).
    ms = jnp.mean(x * x, axis=-1, keepdims=True)
    xn = x * jax.lax.rsqrt(ms + eps)
    # Per-row adaptive scale from the conditioning embedding (MXU matmul,
    # f32 accumulation, inputs kept in the model dtype -> fast MXU path).
    scale = jnp.dot(e_ref[...], wt_ref[...], preferred_element_type=jnp.float32)
    o_ref[...] = ((scale + 1.0) * xn).astype(o_ref.dtype)


def _pick_tile_rows(rows, d_model, itemsize, budget_bytes=24 * 1024 * 1024):
    """Largest row tile whose double-buffered pipeline fits a conservative VMEM
    budget (safe on v5e/v6e 128 MiB and v7x 64 MiB), aligned to the sublane
    pack, while keeping >=2 grid steps so megacore can shard the row axis."""
    sub = max(8, 32 // max(1, itemsize))            # 8 f32 / 16 bf16 / 32 int8
    per_row = 2 * 3 * d_model * itemsize            # 2 buffers x (x, emb, out)
    fixed = 2 * d_model * d_model * itemsize        # resident W^T (+headroom)
    avail = max(budget_bytes - fixed, per_row * sub)
    tr = max(sub, min(1024, avail // per_row))
    tr = (tr // sub) * sub
    half = ((rows + 1) // 2 + sub - 1) // sub * sub  # keep the grid >= 2 steps
    return int(max(sub, min(tr, half)))


def adaptive_rms_norm(x, embedding, proj_weight, *, eps: float = 1e-5,
                      tile_rows=None):
    """AdaptiveRMSNorm forward.

    x:           [..., d_model]             input to normalize
    embedding:   broadcastable to x.shape   conditioning embedding
    proj_weight: [d_model, d_model]         nn.Linear weight (out_features x in_features)
    """
    orig_shape = x.shape
    d_model = orig_shape[-1]
    rows = 1
    for s in orig_shape[:-1]:
        rows *= s

    embedding = jnp.broadcast_to(embedding, x.shape)
    x2 = x.reshape(rows, d_model)
    e2 = embedding.reshape(rows, d_model).astype(x.dtype)
    # Pre-transpose once in the wrapper so the kernel does emb @ W^T directly.
    wt = jnp.transpose(proj_weight).astype(x.dtype)   # (in, out)

    itemsize = jnp.dtype(x.dtype).itemsize
    if tile_rows is None:
        tile_rows = _pick_tile_rows(rows, d_model, itemsize)
    grid = pl.cdiv(rows, tile_rows)   # ragged last tile masked on store (no pad copy)

    # NOTE: stores are lane-dense when d_model is a multiple of 128; smaller
    # widths still work but fall back to masked partial stores.
    # TODO(synk): for d_model < 128, fold rows into the lane dim for full-width stores.

    cost = pl.CostEstimate(
        flops=2 * rows * d_model * d_model + 7 * rows * d_model,
        transcendentals=rows,
        bytes_accessed=(3 * rows * d_model + d_model * d_model) * itemsize,
    )

    kernel = functools.partial(_ada_rmsnorm_kernel, eps=eps)

    out = pl.pallas_call(
        kernel,
        out_shape=jax.ShapeDtypeStruct((rows, d_model), x.dtype),
        grid_spec=pltpu.PrefetchScalarGridSpec(
            num_scalar_prefetch=0,
            grid=(grid,),
            in_specs=[
                pl.BlockSpec((tile_rows, d_model), lambda i: (i, 0)),
                pl.BlockSpec((tile_rows, d_model), lambda i: (i, 0)),
                # Constant index_map -> weight fetched once, stays in VMEM.
                pl.BlockSpec((d_model, d_model), lambda i: (0, 0)),
            ],
            out_specs=pl.BlockSpec((tile_rows, d_model), lambda i: (i, 0)),
        ),
        compiler_params=pltpu.CompilerParams(
            dimension_semantics=("parallel",),
            vmem_limit_bytes=48 * 1024 * 1024,   # fits v5e/v6e/v7x, allows big tiles
        ),
        cost_estimate=cost,
    )(x2, e2, wt)

    return out.reshape(orig_shape)


if __name__ == "__main__":
    key = jax.random.PRNGKey(0)
    batch, seq, d_model = 2, 8, 128   # lane-dense last dim (multiple of 128)
    eps = 1e-5

    kx, ke, kw = jax.random.split(key, 3)
    x = jax.random.normal(kx, (batch, seq, d_model), dtype=jnp.float32)
    emb = jax.random.normal(ke, (batch, seq, d_model), dtype=jnp.float32)
    # Module init is nn.init.zeros_(project_layer.weight); perturb it
    # deterministically so the adaptive-scale (matmul) path is exercised.
    proj_w = 0.02 * jax.random.normal(kw, (d_model, d_model), dtype=jnp.float32)

    out = adaptive_rms_norm(x, emb, proj_w, eps=eps)
    out = jax.block_until_ready(out)

    # Pure-JAX reference (same semantics as the PyTorch forward).
    xf = x.astype(jnp.float32)
    xn = xf * jax.lax.rsqrt(jnp.mean(xf * xf, axis=-1, keepdims=True) + eps)
    scale = jnp.einsum("bsd,ed->bse", emb.astype(jnp.float32),
                       proj_w.astype(jnp.float32),
                       precision=jax.lax.Precision.HIGHEST)   # emb @ W.T
    ref = ((scale + 1.0) * xn).astype(x.dtype)
    assert jnp.allclose(out, ref, atol=2e-3, rtol=1e-3), "mismatch vs reference"

    print("KERNEL_OK")
</pallas_src>

<mosaic_0001>
module attributes {stable_mosaic.version = 11 : i64} {
  func.func @_ada_rmsnorm_kernel(%arg0: i32, %arg1: memref<8x128xf32, #tpu.memory_space<vmem>>, %arg2: memref<8x128xf32, #tpu.memory_space<vmem>>, %arg3: memref<128x128xf32, #tpu.memory_space<vmem>>, %arg4: memref<8x128xf32, #tpu.memory_space<vmem>>) attributes {dimension_semantics = [#tpu.dimension_semantics<parallel>], iteration_bounds = array<i64: 2>, scalar_prefetch = 0 : i64, scratch_operands = 0 : i64, tpu.core_type = #tpu.core_type<tc>, window_params = [{transform_indices = @transform_0, window_bounds = array<i64: 8, 128>}, {transform_indices = @transform_1, window_bounds = array<i64: 8, 128>}, {pipeline_mode = #tpu.pipeline_mode<synchronous>, transform_indices = @transform_2, window_bounds = array<i64: 128, 128>}, {transform_indices = @transform_3, window_bounds = array<i64: 8, 128>}]} {
    %c0 = arith.constant 0 : index
    %c0_0 = arith.constant 0 : index
    %0 = vector.load %arg1[%c0, %c0_0] : memref<8x128xf32, #tpu.memory_space<vmem>>, vector<8x128xf32>
    %1 = arith.mulf %0, %0 : vector<8x128xf32>
    %cst = arith.constant dense<0.000000e+00> : vector<8xf32>
    %2 = vector.multi_reduction <add>, %1, %cst [1] : vector<8x128xf32> to vector<8xf32>
    %3 = vector.shape_cast %2 : vector<8xf32> to vector<8x1xf32>
    %cst_1 = arith.constant 1.280000e+02 : f32
    %4 = vector.broadcast %cst_1 : f32 to vector<8x1xf32>
    %5 = arith.divf %3, %4 : vector<8x1xf32>
    %cst_2 = arith.constant 9.99999974E-6 : f32
    %6 = vector.broadcast %cst_2 : f32 to vector<8x1xf32>
    %7 = arith.addf %5, %6 : vector<8x1xf32>
    %8 = math.rsqrt %7 : vector<8x1xf32>
    %9 = vector.broadcast %8 : vector<8x1xf32> to vector<8x128xf32>
    %10 = arith.mulf %0, %9 : vector<8x128xf32>
    %c0_3 = arith.constant 0 : index
    %c0_4 = arith.constant 0 : index
    %11 = vector.load %arg2[%c0_3, %c0_4] : memref<8x128xf32, #tpu.memory_space<vmem>>, vector<8x128xf32>
    %c0_5 = arith.constant 0 : index
    %c0_6 = arith.constant 0 : index
    %12 = vector.load %arg3[%c0_5, %c0_6] : memref<128x128xf32, #tpu.memory_space<vmem>>, vector<128x128xf32>
    %cst_7 = arith.constant dense<0.000000e+00> : vector<8x128xf32>
    %13 = tpu.matmul %11, %12, %cst_7 {dimension_numbers = #tpu.dot_dimension_numbers<[1], [0], [0], [1], [0, 0, 1, 1], [], []>} : vector<8x128xf32>, vector<128x128xf32>, vector<8x128xf32> -> vector<8x128xf32>
    %cst_8 = arith.constant 1.000000e+00 : f32
    %14 = vector.broadcast %cst_8 : f32 to vector<8x128xf32>
    %15 = arith.addf %13, %14 : vector<8x128xf32>
    %16 = arith.mulf %15, %10 : vector<8x128xf32>
    %c0_9 = arith.constant 0 : index
    %c0_10 = arith.constant 0 : index
    %17 = vector.load %arg4[%c0_9, %c0_10] : memref<8x128xf32, #tpu.memory_space<vmem>>, vector<8x128xf32>
    tpu.vector_store %arg4[%c0_9, %c0_10], %16 {strides = array<i32>} : memref<8x128xf32, #tpu.memory_space<vmem>>, vector<8x128xf32>,
    return
  }
  func.func @transform_0(%arg0: i32) -> (i32, i32) {
    %c0_i32 = arith.constant 0 : i32
    %c0_i32_0 = arith.constant 0 : i32
    return %arg0, %c0_i32 : i32, i32
  }
  func.func @transform_1(%arg0: i32) -> (i32, i32) {
    %c0_i32 = arith.constant 0 : i32
    %c0_i32_0 = arith.constant 0 : i32
    return %arg0, %c0_i32 : i32, i32
  }
  func.func @transform_2(%arg0: i32) -> (i32, i32) {
    %c0_i32 = arith.constant 0 : i32
    %c0_i32_0 = arith.constant 0 : i32
    %c0_i32_1 = arith.constant 0 : i32
    return %c0_i32, %c0_i32_0 : i32, i32
  }
  func.func @transform_3(%arg0: i32) -> (i32, i32) {
    %c0_i32 = arith.constant 0 : i32
    %c0_i32_0 = arith.constant 0 : i32
    return %arg0, %c0_i32 : i32, i32
  }
}

</mosaic_0001>

<llo_original>
// kernel: tpu_custom_call.1
$region0: #{tpu_custom_call.1}
  #allocation0 [shape = 'u32[]', space=smem, size = 0x4, offset = 0x4, fixed_abs, tag = 'smem constant byte address 0x4 - core index']
  #allocation1 [shape = 'u32[72,128]{1,0:T(1,128)}', space=vmem, size = 0x9000, scoped, tag = 'internal scratch']
  %s0 = inlined_call_operand.hbm [shape: f32[16,128], index: 0, kind: input, shape index: {}]
  %s1 = inlined_call_operand.hbm [shape: f32[16,128], index: 1, kind: input, shape index: {}]
  %s2 = inlined_call_operand.hbm [shape: f32[128,128], index: 2, kind: input, shape index: {}]
  %s3 = inlined_call_operand.hbm [shape: f32[16,128], index: 3, kind: output, shape index: {}]
  %s4 = sld [smem:[#allocation0]]
  $region57: #{tpu_custom_call.1} parent=0
    _
  %s6 = ssub.s32 1, %s4
  %s7 = scalar_select 0, %s6, %s4
  $region1: #{tpu_custom_call.1} parent=0
    #allocation2 [shape = 'u8[8192]{0}', space=vmem, size = 0x2000, scoped, tag = 'input window, operand 0']
    #allocation3 [shape = 's32[2]{0}', space=sflag, size = 0x8, scoped, tag = 'scoped memory for tpu_custom_call.1']
    #allocation4 [shape = 's32[2]{0}', space=sflag, size = 0x8, scoped, tag = 'scoped memory for tpu_custom_call.1']
    #allocation5 [shape = 'u8[8192]{0}', space=vmem, size = 0x2000, scoped, tag = 'input window, operand 1']
    #allocation6 [shape = 's32[2]{0}', space=sflag, size = 0x8, scoped, tag = 'scoped memory for tpu_custom_call.1']
    #allocation7 [shape = 'u8[65536]{0}', space=vmem, size = 0x10000, scoped, tag = 'input window, operand 2, single buffered']
    #allocation8 [shape = 'u8[8192]{0}', space=vmem, size = 0x2000, scoped, tag = 'output window, operand 0']
    %8 = vsyncpa [#allocation3], 0
    %s9 = scalar_lea.sflag [#allocation3], 1
    %10 = vsyncpa %s9, 0
    %11 = vsyncpa [#allocation6], 0
    %s12 = scalar_lea.sflag [#allocation6], 1
    %13 = vsyncpa %s12, 0
    %14 = vsyncpa [#allocation4], 0
    %s15 = scalar_lea.sflag [#allocation4], 1
    %16 = vsyncpa %s15, 0
    loop: start=0, step=1, limit=4
    $region2: #{tpu_custom_call.1} parent=1 // loop_pre_header
      _
    $region3: #{tpu_custom_call.1} parent=1 // loop_header
      %s18 = sphi 0, %s22
      %p19 = scmp.ge.s32.totalorder %s18, 4
      %s28 = sphi 0, %s30
      %s31 = sphi 0, %s28
      %s32 = sphi 0, %s31
      %s48 = sphi 0, %s32
      %s54 = sphi 0, %s56
      %s57 = sphi 0, %s54
      %s58 = sphi 0, %s57
      %s74 = sphi 0, %s58
      %s78 = sphi 0, %s78
      %s80 = sphi 0, %s78
      %s81 = sphi 0, %s80
      %s95 = sphi 0, %s81
      %s101 = sphi 0, %s103
      %s104 = sphi 0, %s101
      %s105 = sphi 0, %s104
      %s121 = sphi 0, %s105
    $region4: #{tpu_custom_call.1} parent=1 // loop_header_branch
      %21 = sbr.rel (%p19) target = $region8
    $region5: #{tpu_custom_call.1} parent=1 // loop_body
      %s23 = ssub.s32 %s18, 1
      %s24 = ssub.s32 %s18, 2
      %s25 = sadd.s32 %s18, 1
      %s26 = ssub.s32 %s18, %s25
      %p27 = scmp.eq.s32.totalorder %s26, 0
      %s29 = sadd.s32 %s28, 1
      %s30 = scalar_select %p27, %s28, %s29
      %p33 = pneg %p27
      %p34 = scmp.eq.s32.totalorder %s18, 1
      %p35 = por %p33, %p34
      %p36 = scmp.ne.s32.totalorder %s28, %s31
      %p37 = scmp.eq.s32.totalorder %s18, 0
      %p38 = por %p36, %p37
      %p39 = scmp.ne.s32.totalorder %s28, %s31
      %p40 = scmp.eq.s32.totalorder %s23, 1
      %p41 = por %p39, %p40
      %p42 = scmp.ne.s32.totalorder %s31, %s32
      %p43 = scmp.eq.s32.totalorder %s23, 0
      %p44 = por %p42, %p43
      %p45 = scmp.ne.s32.totalorder %s31, %s32
      %p46 = scmp.eq.s32.totalorder %s24, 1
      %p47 = por %p45, %p46
      %p49 = scmp.ne.s32.totalorder %s32, %s48
      %p50 = scmp.eq.s32.totalorder %s24, 0
      %p51 = por %p49, %p50
      %s52 = ssub.s32 %s18, %s25
      %p53 = scmp.eq.s32.totalorder %s52, 0
      %s55 = sadd.s32 %s54, 1
      %s56 = scalar_select %p53, %s54, %s55
      %p59 = pneg %p53
      %p60 = scmp.eq.s32.totalorder %s18, 1
      %p61 = por %p59, %p60
      %p62 = scmp.ne.s32.totalorder %s54, %s57
      %p63 = scmp.eq.s32.totalorder %s18, 0
      %p64 = por %p62, %p63
      %p65 = scmp.ne.s32.totalorder %s54, %s57
      %p66 = scmp.eq.s32.totalorder %s23, 1
      %p67 = por %p65, %p66
      %p68 = scmp.ne.s32.totalorder %s57, %s58
      %p69 = scmp.eq.s32.totalorder %s23, 0
      %p70 = por %p68, %p69
      %p71 = scmp.ne.s32.totalorder %s57, %s58
      %p72 = scmp.eq.s32.totalorder %s24, 1
      %p73 = por %p71, %p72
      %p75 = scmp.ne.s32.totalorder %s58, %s74
      %p76 = scmp.eq.s32.totalorder %s24, 0
      %p77 = por %p75, %p76
      %s79 = sadd.s32 %s78, 1
      %p82 = scmp.eq.s32.totalorder %s18, 1
      %p83 = scmp.ne.s32.totalorder %s78, %s80
      %p84 = scmp.eq.s32.totalorder %s18, 0
      %p85 = por %p83, %p84
      %p86 = scmp.ne.s32.totalorder %s78, %s80
      %p87 = scmp.eq.s32.totalorder %s23, 1
      %p88 = por %p86, %p87
      %p89 = scmp.ne.s32.totalorder %s80, %s81
      %p90 = scmp.eq.s32.totalorder %s23, 0
      %p91 = por %p89, %p90
      %p92 = scmp.ne.s32.totalorder %s80, %s81
      %p93 = scmp.eq.s32.totalorder %s24, 1
      %p94 = por %p92, %p93
      %p96 = scmp.ne.s32.totalorder %s81, %s95
      %p97 = scmp.eq.s32.totalorder %s24, 0
      %p98 = por %p96, %p97
      %s99 = ssub.s32 %s18, %s25
      %p100 = scmp.eq.s32.totalorder %s99, 0
      %s102 = sadd.s32 %s101, 1
      %s103 = scalar_select %p100, %s101, %s102
      %p106 = pneg %p100
      %p107 = scmp.eq.s32.totalorder %s18, 1
      %p108 = por %p106, %p107
      %p109 = scmp.ne.s32.totalorder %s101, %s104
      %p110 = scmp.eq.s32.totalorder %s18, 0
      %p111 = por %p109, %p110
      %p112 = scmp.ne.s32.totalorder %s101, %s104
      %p113 = scmp.eq.s32.totalorder %s23, 1
      %p114 = por %p112, %p113
      %p115 = scmp.ne.s32.totalorder %s104, %s105
      %p116 = scmp.eq.s32.totalorder %s23, 0
      %p117 = por %p115, %p116
      %p118 = scmp.ne.s32.totalorder %s104, %s105
      %p119 = scmp.eq.s32.totalorder %s24, 1
      %p120 = por %p118, %p119
      %p122 = scmp.ne.s32.totalorder %s105, %s121
      %p123 = scmp.eq.s32.totalorder %s24, 0
      %p124 = por %p122, %p123
      %p125 = scmp.le.s32.totalorder 1, %s18
      %p126 = scmp.lt.s32.totalorder %s18, 3
      %p127 = pnand %p125, %p126
      %p128 = pneg %p127
      // Predicated region
      $region9: #{tpu_custom_call.1} parent=5 // pred_check
        _
      $region10: #{tpu_custom_call.1} parent=5 // pred_check_branch
        %130 = sbr.rel (%p127) target = $region12
      $region11: #{tpu_custom_call.1} parent=5 // pred_region
        %s131 = ssub.s32 %s18, 1
        // Predicated region
        $region13: #{tpu_custom_call.1} parent=11 // pred_check
          %p132 = pneg %p91
        $region14: #{tpu_custom_call.1} parent=11 // pred_check_branch
          %134 = sbr.rel (%p132) target = $region16
        $region15: #{tpu_custom_call.1} parent=11 // pred_region
          %136 = vsyncadd [#allocation6], 0
          %s137 = sshll.u32 %s2, 4
          %s138 = int_to_ptr.hbm [resolvable:$true] %s137
          %s139 = sshll.u32 [#allocation7], 4
          %s140 = int_to_ptr.vmem [resolvable:$true] %s139
          %145 = dma.hbm_to_vmem [thread:$0]  %s138, 2048, %s140, [#allocation6], 128, 128, 8
        $region16: #{tpu_custom_call.1} parent=11 // pred_fallthru
          _
      $region12: #{tpu_custom_call.1} parent=5 // pred_fallthru
        _
      %p146 = scmp.lt.s32.totalorder %s18, 2
      // Predicated region
      $region17: #{tpu_custom_call.1} parent=5 // pred_check
        %p147 = pneg %p146
      $region18: #{tpu_custom_call.1} parent=5 // pred_check_branch
        %149 = sbr.rel (%p147) target = $region20
      $region19: #{tpu_custom_call.1} parent=5 // pred_region
        // Predicated region
        $region21: #{tpu_custom_call.1} parent=19 // pred_check
          %p150 = pneg %p38
        $region22: #{tpu_custom_call.1} parent=19 // pred_check_branch
          %152 = sbr.rel (%p150) target = $region24
        $region23: #{tpu_custom_call.1} parent=19 // pred_region
          %s153 = sand.u32 %s28, 1
          %s154 = scalar_lea.sflag [#allocation3], %s153
          %s155 = sand.u32 %s28, 1
          %s156 = smul.addr %s155, 8
          %s157 = scalar_lea.vmem [#allocation2], %s156
          %159 = vsyncadd %s154, 0
          %s160 = smul.addr %s18, 8
          %s161 = scalar_lea.hbm %s0, %s160
          %s163 = sshll.u32 %s161, 4
          %s164 = int_to_ptr.hbm [resolvable:$true] %s163
          %s165 = sshll.u32 %s157, 4
          %s166 = int_to_ptr.vmem [resolvable:$true] %s165
          %168 = dma.hbm_to_vmem [thread:$0]  %s164, 128, %s166, %s154
        $region24: #{tpu_custom_call.1} parent=19 // pred_fallthru
          _
        // Predicated region
        $region25: #{tpu_custom_call.1} parent=19 // pred_check
          %p169 = pneg %p64
        $region26: #{tpu_custom_call.1} parent=19 // pred_check_branch
          %171 = sbr.rel (%p169) target = $region28
        $region27: #{tpu_custom_call.1} parent=19 // pred_region
          %s172 = sand.u32 %s18, 1
          %s173 = scalar_lea.sflag [#allocation6], %s172
          %s174 = sand.u32 %s54, 1
          %s175 = smul.addr %s174, 8
          %s176 = scalar_lea.vmem [#allocation5], %s175
          %178 = vsyncadd %s173, 0
          %s179 = smul.addr %s18, 8
          %s180 = scalar_lea.hbm %s1, %s179
          %s182 = sshll.u32 %s180, 4
          %s183 = int_to_ptr.hbm [resolvable:$true] %s182
          %s184 = sshll.u32 %s176, 4
          %s185 = int_to_ptr.vmem [resolvable:$true] %s184
          %187 = dma.hbm_to_vmem [thread:$0]  %s183, 128, %s185, %s173
        $region28: #{tpu_custom_call.1} parent=19 // pred_fallthru
          _
      $region20: #{tpu_custom_call.1} parent=5 // pred_fallthru
        _
      %p188 = scmp.le.s32.totalorder 1, %s18
      %p189 = scmp.lt.s32.totalorder %s18, 3
      %p190 = pnand %p188, %p189
      %p191 = pneg %p190
      // Predicated region
      $region29: #{tpu_custom_call.1} parent=5 // pred_check
        _
      $region30: #{tpu_custom_call.1} parent=5 // pred_check_branch
        %193 = sbr.rel (%p190) target = $region32
      $region31: #{tpu_custom_call.1} parent=5 // pred_region
        %s194 = ssub.s32 %s18, 1
        %s195 = sand.u32 %s31, 1
        %s196 = scalar_lea.sflag [#allocation3], %s195
        %s197 = sand.u32 %s31, 1
        %s198 = smul.addr %s197, 8
        %s199 = scalar_lea.vmem [#allocation2], %s198
        // Predicated region
        $region33: #{tpu_custom_call.1} parent=31 // pred_check
          %p200 = pneg %p44
        $region34: #{tpu_custom_call.1} parent=31 // pred_check_branch
          %202 = sbr.rel (%p200) target = $region36
        $region35: #{tpu_custom_call.1} parent=31 // pred_region
          %204 = dma.done %s196, 128
        $region36: #{tpu_custom_call.1} parent=31 // pred_fallthru
          _
        %s205 = sand.u32 %s23, 1
        %s206 = scalar_lea.sflag [#allocation6], %s205
        %s207 = sand.u32 %s57, 1
        %s208 = smul.addr %s207, 8
        %s209 = scalar_lea.vmem [#allocation5], %s208
        // Predicated region
        $region37: #{tpu_custom_call.1} parent=31 // pred_check
          %p210 = pneg %p70
        $region38: #{tpu_custom_call.1} parent=31 // pred_check_branch
          %212 = sbr.rel (%p210) target = $region40
        $region39: #{tpu_custom_call.1} parent=31 // pred_region
          %214 = dma.done %s206, 128
        $region40: #{tpu_custom_call.1} parent=31 // pred_fallthru
          _
        // Predicated region
        $region41: #{tpu_custom_call.1} parent=31 // pred_check
          %p215 = pneg %p91
        $region42: #{tpu_custom_call.1} parent=31 // pred_check_branch
          %217 = sbr.rel (%p215) target = $region44
        $region43: #{tpu_custom_call.1} parent=31 // pred_region
          %219 = dma.done [#allocation6], 2048
        $region44: #{tpu_custom_call.1} parent=31 // pred_fallthru
          _
        %s220 = sand.u32 %s31, 1
        %s221 = scalar_lea.sflag [#allocation3], %s220
        %s222 = sand.u32 %s31, 1
        %s223 = smul.addr %s222, 8
        %s224 = scalar_lea.vmem [#allocation2], %s223
        %p225 = pneg %p44
        %p226 = pneg %p41
        %s227 = sand.u32 %s23, 1
        %s228 = scalar_lea.sflag [#allocation6], %s227
        %s229 = sand.u32 %s57, 1
        %s230 = smul.addr %s229, 8
        %s231 = scalar_lea.vmem [#allocation5], %s230
        %p232 = pneg %p70
        %p233 = pneg %p67
        %p234 = pneg %p91
        %p235 = pneg %p88
        %p236 = pneg %p117
        %p237 = pneg %p114
        %s238 = sand.u32 %s104, 1
        %s239 = scalar_lea.sflag [#allocation4], %s238
        %s240 = sand.u32 %s104, 1
        %s241 = smul.addr %s240, 8
        %s242 = scalar_lea.vmem [#allocation8], %s241
        %v243 = vld [vmem:[%s199] sm:$0xff]
        %v244 = vmul.f32 %v243, %v243
        %245 = vadd.xlane.f32.xlu0 %v244
        %v246 = vpop.xlane.xlu0 %245
        %v247 = vrcp.pop 128.0
        %v248 = vmul.f32 128.0, %v247
        %v249 = vsub.f32 1.0, %v248
        %v250 = vmul.f32 %v247, %v249
        %v251 = vadd.f32 %v247, %v250
        %vm252 = vweird.f32 %v247
        %v253 = vsel %vm252, %v247, %v251
        %v254 = vmul.f32 %v246, %v253
        %v255 = vadd.f32 %v254, 1e-05
        %v256 = vrsqrt.pop %v255
        %v257 = vmul.f32 %v256, %v255
        %v258 = vmul.f32 %v257, %v256
        %v259 = vmul.f32 0.5, %v258
        %v260 = vsub.f32 1.5, %v259
        %v261 = vmul.f32 %v256, %v260
        %vm262 = vweird.f32 %v255
        %vm263 = vweird.f32 %v256
        %vm264 = vmor %vm262, %vm263
        %v265 = vsel %vm264, %v256, %v261
        %v266 = vmul.f32 %v243, %v265
        %v267 = vld [vmem:[%s209] sm:$0xff]
        %v268 = vld [vmem:[#allocation7] sm:$0xff]
        %v269 = vld [vmem:[#allocation7 + $0x8] sm:$0xff]
        %v270 = vld [vmem:[#allocation7 + $0x10] sm:$0xff]
        %v271 = vld [vmem:[#allocation7 + $0x18] sm:$0xff]
        %v272 = vld [vmem:[#allocation7 + $0x20] sm:$0xff]
        %v273 = vld [vmem:[#allocation7 + $0x28] sm:$0xff]
        %v274 = vld [vmem:[#allocation7 + $0x30] sm:$0xff]
        %v275 = vld [vmem:[#allocation7 + $0x38] sm:$0xff]
        %v276 = vld [vmem:[#allocation7 + $0x40] sm:$0xff]
        %v277 = vld [vmem:[#allocation7 + $0x48] sm:$0xff]
        %v278 = vld [vmem:[#allocation7 + $0x50] sm:$0xff]
        %v279 = vld [vmem:[#allocation7 + $0x58] sm:$0xff]
        %v280 = vld [vmem:[#allocation7 + $0x60] sm:$0xff]
        %v281 = vld [vmem:[#allocation7 + $0x68] sm:$0xff]
        %v282 = vld [vmem:[#allocation7 + $0x70] sm:$0xff]
        %v283 = vld [vmem:[#allocation7 + $0x78] sm:$0xff]
        %284 = vmatpush.msra.mxu0 %v283
        %285 = vmatpush.msra.mxu0 %v282
        %286 = vmatpush.msra.mxu0 %v281
        %287 = vmatpush.msra.mxu0 %v280
        %288 = vmatpush.msra.mxu0 %v279
        %289 = vmatpush.msra.mxu0 %v278
        %290 = vmatpush.msra.mxu0 %v277
        %291 = vmatpush.msra.mxu0 %v276
        %292 = vmatpush.msra.mxu0 %v275
        %293 = vmatpush.msra.mxu0 %v274
        %294 = vmatpush.msra.mxu0 %v273
        %295 = vmatpush.msra.mxu0 %v272
        %296 = vmatpush.msra.mxu0 %v271
        %297 = vmatpush.msra.mxu0 %v270
        %298 = vmatpush.msra.mxu0 %v269
        %299 = vmatpush.msra.mxu0 %v268
        %300 = vmatmul.f32.gmra.mxu0 %v267
        %v301 = vpop.f32.mrf.mxu0
        %v302 = vadd.f32 1.0, %v301
        %303 = vdwg.mxu0
        %v304 = vmul.f32 %v302, %v266
        %305 = vst [vmem:[%s242] sm:$0xff] %v304
        %s306 = sand.u32 %s104, 1
        %s307 = scalar_lea.sflag [#allocation4], %s306
        %s308 = sand.u32 %s104, 1
        %s309 = smul.addr %s308, 8
        %s310 = scalar_lea.vmem [#allocation8], %s309
        // Predicated region
        $region45: #{tpu_custom_call.1} parent=31 // pred_check
          %p311 = pneg %p114
        $region46: #{tpu_custom_call.1} parent=31 // pred_check_branch
          %313 = sbr.rel (%p311) target = $region48
        $region47: #{tpu_custom_call.1} parent=31 // pred_region
          %315 = vsyncadd %s307, 0
          %s316 = smul.addr %s23, 8
          %s317 = scalar_lea.hbm %s3, %s316
          %s319 = sshll.u32 %s310, 4
          %s320 = int_to_ptr.vmem [resolvable:$true] %s319
          %s321 = sshll.u32 %s317, 4
          %s322 = int_to_ptr.hbm [resolvable:$true] %s321
          %324 = dma.vmem_to_hbm [thread:$0]  %s320, 128, %s322, %s307
        $region48: #{tpu_custom_call.1} parent=31 // pred_fallthru
          _
      $region32: #{tpu_custom_call.1} parent=5 // pred_fallthru
        _
      %p325 = scmp.le.s32.totalorder 2, %s18
      // Predicated region
      $region49: #{tpu_custom_call.1} parent=5 // pred_check
        %p326 = pneg %p325
      $region50: #{tpu_custom_call.1} parent=5 // pred_check_branch
        %328 = sbr.rel (%p326) target = $region52
      $region51: #{tpu_custom_call.1} parent=5 // pred_region
        %s329 = ssub.s32 %s18, 2
        // Predicated region
        $region53: #{tpu_custom_call.1} parent=51 // pred_check
          %p330 = pneg %p120
        $region54: #{tpu_custom_call.1} parent=51 // pred_check_branch
          %332 = sbr.rel (%p330) target = $region56
        $region55: #{tpu_custom_call.1} parent=51 // pred_region
          %s333 = sand.u32 %s105, 1
          %s334 = scalar_lea.sflag [#allocation4], %s333
          %s335 = sand.u32 %s105, 1
          %s336 = smul.addr %s335, 8
          %s337 = scalar_lea.vmem [#allocation8], %s336
          %339 = dma.done %s334, 128
        $region56: #{tpu_custom_call.1} parent=51 // pred_fallthru
          _
      $region52: #{tpu_custom_call.1} parent=5 // pred_fallthru
        _
    $region6: #{tpu_custom_call.1} parent=1 // loop_footer
      %s22 = sadd.s32 1, %s18
    $region7: #{tpu_custom_call.1} parent=1 // loop_footer_branch
      %17 = sbr.rel target = $region3
    $region8: #{tpu_custom_call.1} parent=1 // loop_exit
      _
    %340 = vsyncpa [#allocation3], 1
    %s341 = scalar_lea.sflag [#allocation3], 1
    %342 = vsyncpa %s341, 1
    %343 = vsyncpa [#allocation6], 1
    %s344 = scalar_lea.sflag [#allocation6], 1
    %345 = vsyncpa %s344, 1
    %346 = vsyncpa [#allocation4], 1
    %s347 = scalar_lea.sflag [#allocation4], 1
    %348 = vsyncpa %s347, 1

</llo_original>
